<compile_context>
chip_gen: v7x
topology: tpu7x:2x2x1
jax: 0.10.0
libtpu: 0.0.40
codegen_flags: <defaults>
</compile_context>

<pallas_src>
import functools

import jax
import jax.numpy as jnp
from jax import lax
from jax.experimental import pallas as pl
from jax.experimental.pallas import tpu as pltpu

_BN_EPS = 1e-5
_VMEM_LIMIT = 48 * 1024 * 1024          # explicit scoped-VMEM limit (safe on v5e/v6e/v7x)
_TILE_BUDGET = 24 * 1024 * 1024         # target VMEM footprint of pipelined tiles
_IMPLICIT_PATCH_MIN = 2 * 1024 * 1024   # use implicit GEMM if patch matrix would exceed this
_IMPLICIT_W_MAX = 8 * 1024 * 1024       # ... and the resident weight stays below this
_IMPLICIT_IMG_MAX = 8 * 1024 * 1024     # ... and the resident image stays below this


# ----------------------------------------------------------------------------
# small helpers
# ----------------------------------------------------------------------------
def _cdiv(a, b):
    return -(-a // b)


def _round_up(x, m):
    return _cdiv(x, m) * m


def _pad2(x, rows, cols):
    pr, pc = rows - x.shape[0], cols - x.shape[1]
    if pr == 0 and pc == 0:
        return x
    return jnp.pad(x, ((0, pr), (0, pc)))


def _pad1(v, n):
    if v.shape[0] == n:
        return v
    return jnp.pad(v, (0, n - v.shape[0]))


def _pick_div(n, cands):
    for t in cands:
        if n % t == 0:
            return t
    return n


def _pick_tn(Np):
    """N tile for the patch path: big, but keep >=2 blocks (v7x dual core)."""
    if Np <= 128:
        return Np
    for tn in (1024, 512, 256, 128):
        if 2 * tn <= Np and Np % tn == 0:
            return tn
    return 128


def _pick_tm(M, tk, tn):
    """M tile for the patch path sized by a VMEM budget (double buffers + acc)."""
    tm = min(2048, _round_up(M, 8))
    while tm > 8:
        need = 4 * tm * tk + 4 * tk * tn + 4 * tm * tn + 4 * tm * tn
        if need <= _TILE_BUDGET:
            break
        tm = max(8, tm // 2)
    tm = _round_up(tm, 8)
    return tm, _round_up(M, tm)


def _pick_th(OH, OW):
    """Output rows per implicit-GEMM block (whole image rows, ~2048 GEMM rows)."""
    th = max(1, min(OH, 2048 // max(OW, 1)))
    while OH % th:
        th -= 1
    return th


def _apply_act(y, act):
    if act == "relu":
        return jnp.maximum(y, 0.0)
    if act == "lrelu":
        return jnp.where(y >= 0.0, y, 0.2 * y)
    if act == "tanh":
        return jnp.tanh(y)
    return y


# ----------------------------------------------------------------------------
# Pallas kernels
# ----------------------------------------------------------------------------
def _mm_affine_kernel(a_ref, b_ref, s_ref, t_ref, o_ref, acc_ref, *, act):
    """Patch-path tiled matmul with fused per-column affine + activation epilogue."""
    @pl.when(pl.program_id(2) == 0)
    def _():
        acc_ref[...] = jnp.zeros_like(acc_ref)

    acc_ref[...] += jnp.dot(a_ref[...], b_ref[...],
                            preferred_element_type=jnp.float32)

    @pl.when(pl.program_id(2) == pl.num_programs(2) - 1)
    def _():
        y = acc_ref[...] * s_ref[...] + t_ref[...]
        o_ref[...] = _apply_act(y, act).astype(o_ref.dtype)


def _mm_stats_kernel(a_ref, b_ref, o_ref, st_ref, acc_ref):
    """Patch-path tiled matmul emitting per-tile column sum / sum-of-squares."""
    @pl.when(pl.program_id(2) == 0)
    def _():
        acc_ref[...] = jnp.zeros_like(acc_ref)

    acc_ref[...] += jnp.dot(a_ref[...], b_ref[...],
                            preferred_element_type=jnp.float32)

    @pl.when(pl.program_id(2) == pl.num_programs(2) - 1)
    def _():
        acc = acc_ref[...]
        o_ref[...] = acc.astype(o_ref.dtype)
        cs = jnp.sum(acc, axis=0, keepdims=True)
        cq = jnp.sum(acc * acc, axis=0, keepdims=True)
        row = lax.broadcasted_iota(jnp.int32, st_ref.shape, 0)
        st_ref[...] = jnp.where(row == 0, cs, jnp.where(row == 1, cq, 0.0))


def _implicit_accum(x_ref, w_ref, acc_ref, taps, TH, OW, C):
    """Implicit GEMM core: accumulate per-tap (TH*OW, C) @ (C, tn) into acc_ref.

    x_ref : (Hs, Ws, C) whole padded image (VMEM resident)
    w_ref : (len(taps)*C, tn) tap-major weight slab
    """
    i = pl.program_id(2)
    oh0 = pl.multiple_of(i * TH, TH)
    for t, (di, dj) in enumerate(taps):
        a = x_ref[pl.ds(oh0 + di, TH), pl.ds(dj, OW), :]        # (TH, OW, C)
        contrib = jnp.dot(a.reshape(TH * OW, C),
                          w_ref[t * C:(t + 1) * C, :],
                          preferred_element_type=jnp.float32)
        if t == 0:
            acc_ref[...] = contrib
        else:
            acc_ref[...] += contrib


def _implicit_stats_kernel(x_ref, w_ref, o_ref, st_ref, acc_ref,
                           *, taps, TH, OW, C):
    _implicit_accum(x_ref, w_ref, acc_ref, taps, TH, OW, C)
    acc = acc_ref[...]
    o_ref[...] = acc.astype(o_ref.dtype)
    cs = jnp.sum(acc, axis=0, keepdims=True)
    cq = jnp.sum(acc * acc, axis=0, keepdims=True)
    row = lax.broadcasted_iota(jnp.int32, st_ref.shape, 0)
    st_ref[...] = jnp.where(row == 0, cs, jnp.where(row == 1, cq, 0.0))


def _implicit_affine_kernel(x_ref, w_ref, s_ref, t_ref, o_ref, acc_ref,
                            *, taps, TH, OW, C, act):
    _implicit_accum(x_ref, w_ref, acc_ref, taps, TH, OW, C)
    y = acc_ref[...] * s_ref[...] + t_ref[...]
    o_ref[...] = _apply_act(y, act).astype(o_ref.dtype)


def _affine_act_kernel(x_ref, s_ref, t_ref, o_ref, *, act):
    y = x_ref[...].astype(jnp.float32) * s_ref[...] + t_ref[...]
    o_ref[...] = _apply_act(y, act).astype(o_ref.dtype)


# ----------------------------------------------------------------------------
# Pallas wrappers
# ----------------------------------------------------------------------------
def fused_matmul(a, b, *, scale=None, shift=None, act="none", want_stats=False):
    """Patch-path (M, K) @ (K, N) on the MXU, bf16 operands, f32 accumulation."""
    M, K = a.shape
    _, N = b.shape
    Np = _round_up(N, 128)
    Kp0 = _round_up(K, 128)
    ksteps = _cdiv(Kp0, 2048)
    tk = _round_up(_cdiv(Kp0, ksteps), 128)
    Kp = tk * ksteps
    tn = _pick_tn(Np)
    tm, Mp = _pick_tm(M, tk, tn)

    a_p = _pad2(a.astype(jnp.bfloat16), Mp, Kp)
    b_p = _pad2(b.astype(jnp.bfloat16), Kp, Np)

    grid = (Mp // tm, Np // tn, Kp // tk)
    a_spec = pl.BlockSpec((tm, tk), lambda i, j, k: (i, k))
    b_spec = pl.BlockSpec((tk, tn), lambda i, j, k: (k, j))
    o_spec = pl.BlockSpec((tm, tn), lambda i, j, k: (i, j))
    cparams = pltpu.CompilerParams(
        dimension_semantics=("parallel", "parallel", "arbitrary"),
        vmem_limit_bytes=_VMEM_LIMIT)
    scratch = [pltpu.VMEM((tm, tn), jnp.float32)]

    if want_stats:
        nmb = Mp // tm
        st_spec = pl.BlockSpec((8, tn), lambda i, j, k: (i, j))
        y, stats = pl.pallas_call(
            _mm_stats_kernel,
            out_shape=(jax.ShapeDtypeStruct((Mp, Np), jnp.bfloat16),
                       jax.ShapeDtypeStruct((nmb * 8, Np), jnp.float32)),
            grid_spec=pltpu.PrefetchScalarGridSpec(
                num_scalar_prefetch=0, grid=grid,
                in_specs=[a_spec, b_spec],
                out_specs=[o_spec, st_spec],
                scratch_shapes=scratch),
            compiler_params=cparams,
        )(a_p, b_p)
        st = stats.reshape(nmb, 8, Np)
        return y, st[:, 0, :].sum(axis=0), st[:, 1, :].sum(axis=0), Np

    s_p = _pad1(scale.astype(jnp.float32), Np).reshape(1, Np)
    t_p = _pad1(shift.astype(jnp.float32), Np).reshape(1, Np)
    v_spec = pl.BlockSpec((1, tn), lambda i, j, k: (0, j))
    y = pl.pallas_call(
        functools.partial(_mm_affine_kernel, act=act),
        out_shape=jax.ShapeDtypeStruct((Mp, Np), jnp.bfloat16),
        grid_spec=pltpu.PrefetchScalarGridSpec(
            num_scalar_prefetch=0, grid=grid,
            in_specs=[a_spec, b_spec, v_spec, v_spec],
            out_specs=o_spec,
            scratch_shapes=scratch),
        compiler_params=cparams,
    )(a_p, b_p, s_p, t_p)
    return y, Np


def implicit_matmul(ximg, wmat, taps, OH, OW, *, scale=None, shift=None,
                    act="none", want_stats=False):
    """Implicit GEMM over a stride-1 conv: whole padded image resident in VMEM.

    ximg : (N, Hs, Ws, C) bf16 padded input; wmat: (len(taps)*C, F) tap-major.
    Returns the GEMM result with rows ordered (n, oh, ow) and Fp padded columns.
    """
    N, Hs, Ws, C = ximg.shape
    K, F = wmat.shape
    Fp = _round_up(F, 128)
    w_p = _pad2(wmat.astype(jnp.bfloat16), K, Fp)

    tn = Fp if Fp <= 256 else (256 if Fp % 256 == 0 else 128)
    num_j = Fp // tn
    TH = _pick_th(OH, OW)
    num_i = OH // TH
    rows = TH * OW
    M = N * OH * OW

    grid = (N, num_j, num_i)                       # i innermost -> weight fetched once per j
    x_spec = pl.BlockSpec((None, Hs, Ws, C), lambda n, j, i: (n, 0, 0, 0))
    w_spec = pl.BlockSpec((K, tn), lambda n, j, i: (0, j))
    o_spec = pl.BlockSpec((rows, tn), lambda n, j, i: (n * num_i + i, j))
    cparams = pltpu.CompilerParams(
        dimension_semantics=("parallel", "parallel", "parallel"),
        vmem_limit_bytes=_VMEM_LIMIT)
    scratch = [pltpu.VMEM((rows, tn), jnp.float32)]
    common = dict(taps=tuple(taps), TH=TH, OW=OW, C=C)

    if want_stats:
        st_spec = pl.BlockSpec((8, tn), lambda n, j, i: (n * num_i + i, j))
        y, stats = pl.pallas_call(
            functools.partial(_implicit_stats_kernel, **common),
            out_shape=(jax.ShapeDtypeStruct((M, Fp), jnp.bfloat16),
                       jax.ShapeDtypeStruct((N * num_i * 8, Fp), jnp.float32)),
            grid_spec=pltpu.PrefetchScalarGridSpec(
                num_scalar_prefetch=0, grid=grid,
                in_specs=[x_spec, w_spec],
                out_specs=[o_spec, st_spec],
                scratch_shapes=scratch),
            compiler_params=cparams,
        )(ximg, w_p)
        st = stats.reshape(N * num_i, 8, Fp)
        return y, st[:, 0, :].sum(axis=0), st[:, 1, :].sum(axis=0), Fp

    s_p = _pad1(scale.astype(jnp.float32), Fp).reshape(1, Fp)
    t_p = _pad1(shift.astype(jnp.float32), Fp).reshape(1, Fp)
    v_spec = pl.BlockSpec((1, tn), lambda n, j, i: (0, j))
    y = pl.pallas_call(
        functools.partial(_implicit_affine_kernel, act=act, **common),
        out_shape=jax.ShapeDtypeStruct((M, Fp), jnp.bfloat16),
        grid_spec=pltpu.PrefetchScalarGridSpec(
            num_scalar_prefetch=0, grid=grid,
            in_specs=[x_spec, w_spec, v_spec, v_spec],
            out_specs=o_spec,
            scratch_shapes=scratch),
        compiler_params=cparams,
    )(ximg, w_p, s_p, t_p)
    return y, Fp


def pallas_affine_act(x_p, scale_p, shift_p, act):
    """y = act(x * scale[col] + shift[col]) on a lane-dense (rows, Np) bf16 array."""
    Mp, Np = x_p.shape
    tm = _pick_div(Mp, (2048, 1024, 512, 256, 128, 64, 32, 16, 8))
    tn = _pick_div(Np, (512, 256, 128))
    s = scale_p.astype(jnp.float32).reshape(1, Np)
    t = shift_p.astype(jnp.float32).reshape(1, Np)
    return pl.pallas_call(
        functools.partial(_affine_act_kernel, act=act),
        out_shape=jax.ShapeDtypeStruct((Mp, Np), jnp.bfloat16),
        grid_spec=pltpu.PrefetchScalarGridSpec(
            num_scalar_prefetch=0, grid=(Mp // tm, Np // tn),
            in_specs=[pl.BlockSpec((tm, tn), lambda i, j: (i, j)),
                      pl.BlockSpec((1, tn), lambda i, j: (0, j)),
                      pl.BlockSpec((1, tn), lambda i, j: (0, j))],
            out_specs=pl.BlockSpec((tm, tn), lambda i, j: (i, j))),
        compiler_params=pltpu.CompilerParams(
            dimension_semantics=("parallel", "parallel"),
            vmem_limit_bytes=_VMEM_LIMIT),
    )(x_p, s, t)


# ----------------------------------------------------------------------------
# Conv / ConvTranspose lowerings to GEMM operands
# ----------------------------------------------------------------------------
def _im2col(xp, k, stride, OH, OW):
    # xp: (N, Hp, Wp, C) padded input -> (N*OH*OW, k*k*C) bf16, columns (ki,kj,c)
    N, _, _, C = xp.shape
    cols = []
    for i in range(k):
        for j in range(k):
            cols.append(xp[:, i:i + stride * OH:stride,
                           j:j + stride * OW:stride, :])
    pat = jnp.concatenate(cols, axis=-1)
    return pat.reshape(N * OH * OW, k * k * C).astype(jnp.bfloat16)


def _conv_operands_patch(x, w):
    # x: (N,H,W,Cin) bf16 ; w: (Cout,Cin,4,4) PyTorch Conv2d layout
    Cout, Cin, k, _ = w.shape
    N, H, W, _ = x.shape
    OH = (H + 2 - k) // 2 + 1
    OW = (W + 2 - k) // 2 + 1
    xp = jnp.pad(x, ((0, 0), (1, 1), (1, 1), (0, 0)))
    pat = _im2col(xp, k, 2, OH, OW)
    wm = jnp.transpose(w, (2, 3, 1, 0)).reshape(k * k * Cin, Cout)
    return pat, wm, (N, OH, OW)


def _conv_s2d_weight(w):
    """Conv2d weight (Cout,Cin,4,4) -> (16*Cin, Cout) tap-major over (a,b) in {0,1}^2.

    Within a tap, row order is (ph, pw, ci), matching the space-to-depth channel
    order; tap (a, b) multiplies s2d[oh+a, ow+b, :].
    """
    Cout, Cin = w.shape[0], w.shape[1]
    blocks = []
    for a in range(2):
        for b in range(2):
            sub = w[:, :, 2 * a:2 * a + 2, 2 * b:2 * b + 2]      # (Cout,Cin,ph,pw)
            sub = jnp.transpose(sub, (2, 3, 1, 0))               # (ph,pw,Cin,Cout)
            blocks.append(sub.reshape(4 * Cin, Cout))
    return jnp.concatenate(blocks, axis=0)


def _conv_operands_implicit(x, w):
    # Conv2d(k4,s2,p1) == 2x2 stride-1 conv on the space-to-depth padded input.
    Cout, Cin = w.shape[0], w.shape[1]
    N, H, W, _ = x.shape
    OH, OW = H // 2, W // 2
    xp = jnp.pad(x, ((0, 0), (1, 1), (1, 1), (0, 0)))
    s2d = xp.reshape(N, (H + 2) // 2, 2, (W + 2) // 2, 2, Cin)
    s2d = jnp.transpose(s2d, (0, 1, 3, 2, 4, 5)).reshape(N, OH + 1, OW + 1, 4 * Cin)
    wmat = _conv_s2d_weight(w)
    taps = [(a, b) for a in range(2) for b in range(2)]
    return s2d, wmat, taps, (N, OH, OW)


# sub-pixel phase maps for ConvTranspose2d(k=4, s=2, p=1):
#   output parity r -> {3x3 neighbourhood offset a: kernel tap kh}
_PHASE_KMAP = ({0: 3, 1: 1}, {1: 2, 2: 0})


def _convT_weight_matrix(w):
    """(Cin, Cout, 4, 4) ConvTranspose2d weight -> (9*Cin, 4*Cout) matrix.

    Row order tap-major (a, b, ci) over the 3x3 neighbourhood; column order
    (row-parity r, col-parity c, co).  Output pixel (2m+r, 2n+c) is
    neighbourhood(m, n) @ columns(r, c).
    """
    Cin, Cout = w.shape[0], w.shape[1]
    zeros = jnp.zeros((Cin, Cout), w.dtype)
    rows = []
    for a in range(3):
        for b in range(3):
            cols = []
            for r in range(2):
                for c in range(2):
                    kh = _PHASE_KMAP[r].get(a)
                    kw = _PHASE_KMAP[c].get(b)
                    cols.append(zeros if kh is None or kw is None
                                else w[:, :, kh, kw])
            rows.append(jnp.concatenate(cols, axis=1))
    return jnp.concatenate(rows, axis=0)


def _convT_operands_patch(x, w):
    N, H, W, _ = x.shape
    xp = jnp.pad(x, ((0, 0), (1, 1), (1, 1), (0, 0)))
    pat = _im2col(xp, 3, 1, H, W)
    wm = _convT_weight_matrix(w)
    return pat, wm, (N, H, W)


def _convT_operands_implicit(x, w):
    N, H, W, _ = x.shape
    xp = jnp.pad(x, ((0, 0), (1, 1), (1, 1), (0, 0)))
    wmat = _convT_weight_matrix(w)
    taps = [(a, b) for a in range(3) for b in range(3)]
    return xp, wmat, taps, (N, H, W)


def _interleave_phases(y2d, N, H, W, Cout):
    # y2d: (N*H*W, 4*Cout) with column order (r, c, co) -> (N, 2H, 2W, Cout)
    y = y2d.reshape(N, H, W, 2, 2, Cout)
    y = jnp.transpose(y, (0, 1, 3, 2, 4, 5))
    return y.reshape(N, 2 * H, 2 * W, Cout)


def conv_gemm(x, w, kind, *, scale=None, shift=None, act="none",
              want_stats=False, force_path=None):
    """Lower Conv2d / ConvTranspose2d (k4,s2,p1) to one Pallas GEMM.

    Returns dict with: y (rows, Fp) bf16 GEMM output, M valid rows, F valid cols,
    Fp padded cols, dims=(N, OH, OW, Cout) (input spatial for convT),
    and col_sum / col_ssq when want_stats.
    """
    x = x.astype(jnp.bfloat16)
    N, H, W, _ = x.shape
    if kind == "conv":
        Cout, Cin = w.shape[0], w.shape[1]
        OH, OW = (H + 2 - 4) // 2 + 1, (W + 2 - 4) // 2 + 1
        K, F = 16 * Cin, Cout
        Hs, Ws, Cs = H // 2 + 1, W // 2 + 1, 4 * Cin
        shape_ok = (H % 2 == 0) and (W % 2 == 0) and (OW % 8 == 0)
    else:
        Cin, Cout = w.shape[0], w.shape[1]
        OH, OW = H, W
        K, F = 9 * Cin, 4 * Cout
        Hs, Ws, Cs = H + 2, W + 2, Cin
        shape_ok = OW % 8 == 0
    M = N * OH * OW
    patch_bytes = 2 * M * K
    weight_bytes = 2 * K * _round_up(F, 128)
    img_bytes = 2 * N * Hs * Ws * Cs
    can_implicit = shape_ok and img_bytes <= _IMPLICIT_IMG_MAX

    if force_path == "implicit":
        assert can_implicit
        use_implicit = True
    elif force_path == "patch":
        use_implicit = False
    else:
        use_implicit = (can_implicit and patch_bytes > _IMPLICIT_PATCH_MIN
                        and weight_bytes <= _IMPLICIT_W_MAX)

    result = {"M": M, "F": F, "dims": (N, OH, OW, Cout)}
    if use_implicit:
        builder = _conv_operands_implicit if kind == "conv" else _convT_operands_implicit
        ximg, wmat, taps, _ = builder(x, w)
        out = implicit_matmul(ximg, wmat, taps, OH, OW, scale=scale, shift=shift,
                              act=act, want_stats=want_stats)
    else:
        builder = _conv_operands_patch if kind == "conv" else _convT_operands_patch
        pat, wmat, _ = builder(x, w)
        out = fused_matmul(pat, wmat, scale=scale, shift=shift,
                           act=act, want_stats=want_stats)
    if want_stats:
        result["y"], result["col_sum"], result["col_ssq"], result["Fp"] = out
    else:
        result["y"], result["Fp"] = out
    return result


# ----------------------------------------------------------------------------
# U-Net blocks
# ----------------------------------------------------------------------------
def _bn_scale_shift(col_sum, col_ssq, count, gamma, beta):
    mean = col_sum / count
    var = jnp.maximum(col_ssq / count - mean * mean, 0.0)   # biased variance
    scale = gamma * lax.rsqrt(var + _BN_EPS)
    shift = beta - mean * scale
    return scale, shift


def cbr(x, p):
    """Conv2d(k4,s2,p1) -> [BatchNorm | bias] -> LeakyReLU(0.2)."""
    w = p["w"]
    Cout = w.shape[0]
    if "b" in p:                         # norm=None -> conv bias, fused epilogue
        r = conv_gemm(x, w, "conv", scale=jnp.ones((Cout,), jnp.float32),
                      shift=p["b"], act="lrelu")
        y = r["y"]
    else:                                # BatchNorm (training-mode batch stats)
        r = conv_gemm(x, w, "conv", want_stats=True)
        scale, shift = _bn_scale_shift(r["col_sum"][:Cout], r["col_ssq"][:Cout],
                                       float(r["M"]), p["gamma"], p["beta"])
        y = pallas_affine_act(r["y"], _pad1(scale, r["Fp"]),
                              _pad1(shift, r["Fp"]), "lrelu")
    N, OH, OW, _ = r["dims"]
    return y[:r["M"], :Cout].reshape(N, OH, OW, Cout)


def cbdr(x, p):
    """ConvTranspose2d(k4,s2,p1) -> BatchNorm -> ReLU (sub-pixel phases)."""
    w = p["w"]
    Cout = w.shape[1]
    r = conv_gemm(x, w, "convT", want_stats=True)
    F, Fp, M = r["F"], r["Fp"], r["M"]
    cs = r["col_sum"][:F].reshape(4, Cout).sum(axis=0)     # merge the 4 phases
    cq = r["col_ssq"][:F].reshape(4, Cout).sum(axis=0)
    scale, shift = _bn_scale_shift(cs, cq, 4.0 * M, p["gamma"], p["beta"])
    y = pallas_affine_act(r["y"], _pad1(jnp.tile(scale, 4), Fp),
                          _pad1(jnp.tile(shift, 4), Fp), "relu")
    N, H, W, _ = r["dims"]
    return _interleave_phases(y[:M, :F], N, H, W, Cout)


def convT_bias_tanh(x, p):
    """Final ConvTranspose2d (with bias) -> tanh, fused in the GEMM epilogue."""
    w = p["w"]
    Cout = w.shape[1]
    F = 4 * Cout
    r = conv_gemm(x, w, "convT", scale=jnp.ones((F,), jnp.float32),
                  shift=jnp.tile(p["b"], 4), act="tanh")
    N, H, W, _ = r["dims"]
    return _interleave_phases(r["y"][:r["M"], :F], N, H, W, Cout)


def unet_forward(params, x_nchw):
    x = jnp.transpose(x_nchw, (0, 2, 3, 1))                         # -> NHWC
    e1 = cbr(x, params["e1"])
    e2 = cbr(e1, params["e2"])
    e3 = cbr(e2, params["e3"])
    e4 = cbr(e3, params["e4"])
    e5 = cbr(e4, params["e5"])
    e6 = cbr(e5, params["e6"])
    e7 = cbr(e6, params["e7"])
    e8 = cbr(e7, params["e8"])

    d1 = cbdr(e8, params["d1"])
    d2 = cbdr(jnp.concatenate([d1, e7], axis=-1), params["d2"])
    d3 = cbdr(jnp.concatenate([d2, e6], axis=-1), params["d3"])
    d4 = cbdr(jnp.concatenate([d3, e5], axis=-1), params["d4"])
    d5 = cbdr(jnp.concatenate([d4, e4], axis=-1), params["d5"])
    d6 = cbdr(jnp.concatenate([d5, e3], axis=-1), params["d6"])
    d7 = cbdr(jnp.concatenate([d6, e2], axis=-1), params["d7"])
    d8 = convT_bias_tanh(jnp.concatenate([d7, e1], axis=-1), params["d8"])
    return jnp.transpose(d8, (0, 3, 1, 2)).astype(jnp.float32)      # -> NCHW


# ----------------------------------------------------------------------------
# Deterministic parameter initialization (same structure as the PyTorch module;
# `base` is the U-Net width -- the module uses 64, the smoke test uses 8)
# ----------------------------------------------------------------------------
def init_params(key, in_channels=3, out_channels=3, base=64):
    c = base
    enc = [(in_channels, c, True),       # e1: norm=None -> bias
           (c, 2 * c, False), (2 * c, 4 * c, False), (4 * c, 8 * c, False),
           (8 * c, 8 * c, False), (8 * c, 8 * c, False), (8 * c, 8 * c, False),
           (8 * c, 8 * c, True)]         # e8: norm=None -> bias
    dec = [(8 * c, 8 * c), (16 * c, 8 * c), (16 * c, 8 * c), (16 * c, 8 * c),
           (16 * c, 4 * c), (8 * c, 2 * c), (4 * c, c)]
    keys = iter(jax.random.split(key, 32))
    params = {}
    for idx, (cin, cout, has_bias) in enumerate(enc, 1):
        p = {"w": jax.random.normal(next(keys), (cout, cin, 4, 4),
                                    jnp.float32) * 0.05}
        if has_bias:
            p["b"] = jax.random.normal(next(keys), (cout,), jnp.float32) * 0.05
        else:
            p["gamma"] = jnp.ones((cout,), jnp.float32)
            p["beta"] = jnp.zeros((cout,), jnp.float32)
        params[f"e{idx}"] = p
    for idx, (cin, cout) in enumerate(dec, 1):
        params[f"d{idx}"] = {
            "w": jax.random.normal(next(keys), (cin, cout, 4, 4),
                                   jnp.float32) * 0.05,
            "gamma": jnp.ones((cout,), jnp.float32),
            "beta": jnp.zeros((cout,), jnp.float32),
        }
    params["d8"] = {
        "w": jax.random.normal(next(keys), (2 * c, out_channels, 4, 4),
                               jnp.float32) * 0.05,
        "b": jax.random.normal(next(keys), (out_channels,), jnp.float32) * 0.05,
    }
    return params


# ----------------------------------------------------------------------------
# Parity checks of both GEMM lowerings against lax convolutions (bf16 operands)
# ----------------------------------------------------------------------------
def _check_close(name, a, b, tol=6e-2):
    a = jnp.asarray(a, jnp.float32)
    b = jnp.asarray(b, jnp.float32)
    assert a.shape == b.shape, (name, a.shape, b.shape)
    err = float(jnp.max(jnp.abs(a - b)))
    assert err < tol, f"{name}: max abs err {err}"


def _parity_checks(key):
    kx, kw1, kw2 = jax.random.split(key, 3)

    # Conv2d(k=4, s=2, p=1)
    x = jax.random.normal(kx, (1, 16, 16, 16), jnp.float32)
    wc = jax.random.normal(kw1, (24, 16, 4, 4), jnp.float32) * 0.05
    xb = x.astype(jnp.bfloat16).astype(jnp.float32)
    wb = wc.astype(jnp.bfloat16).astype(jnp.float32)
    ref = lax.conv_general_dilated(
        xb, jnp.transpose(wb, (2, 3, 1, 0)), (2, 2), ((1, 1), (1, 1)),
        dimension_numbers=("NHWC", "HWIO", "NHWC"),
        precision=lax.Precision.HIGHEST)
    for path in ("implicit", "patch"):
        r = conv_gemm(x, wc, "conv", scale=jnp.ones((24,), jnp.float32),
                      shift=jnp.zeros((24,), jnp.float32), act="none",
                      force_path=path)
        y = r["y"][:r["M"], :24].reshape(1, 8, 8, 24)
        _check_close(f"conv_{path}", y, ref)

    # ConvTranspose2d(k=4, s=2, p=1)
    x2 = jax.random.normal(kx, (1, 8, 8, 16), jnp.float32)
    wt = jax.random.normal(kw2, (16, 12, 4, 4), jnp.float32) * 0.05
    x2b = x2.astype(jnp.bfloat16).astype(jnp.float32)
    wtb = wt.astype(jnp.bfloat16).astype(jnp.float32)
    wflip = jnp.transpose(wtb[:, :, ::-1, ::-1], (2, 3, 0, 1))
    refT = lax.conv_general_dilated(
        x2b, wflip, (1, 1), ((2, 2), (2, 2)), lhs_dilation=(2, 2),
        dimension_numbers=("NHWC", "HWIO", "NHWC"),
        precision=lax.Precision.HIGHEST)
    for path in ("implicit", "patch"):
        r = conv_gemm(x2, wt, "convT", scale=jnp.ones((48,), jnp.float32),
                      shift=jnp.zeros((48,), jnp.float32), act="none",
                      force_path=path)
        y = _interleave_phases(r["y"][:r["M"], :48], 1, 8, 8, 12)
        _check_close(f"convT_{path}", y, refT)


if __name__ == "__main__":
    key = jax.random.PRNGKey(0)
    ckey, pkey, xkey = jax.random.split(key, 3)

    # Validate both conv lowerings (implicit GEMM + patch GEMM) vs lax references.
    _parity_checks(ckey)

    # The 8-level U-Net needs spatial >= 256 (eight stride-2 halvings down to
    # 1x1), so the smallest legal input is (1, 3, 256, 256).  To keep the smoke
    # test small/fast we use a reduced base width of 8 channels (the PyTorch
    # module hard-codes 64); the forward structure is identical.
    params = init_params(pkey, in_channels=3, out_channels=3, base=8)
    x = jax.random.normal(xkey, (1, 3, 256, 256), jnp.float32)

    fwd = jax.jit(unet_forward)
    y = jax.block_until_ready(fwd(params, x))

    assert y.shape == (1, 3, 256, 256), y.shape
    assert bool(jnp.all(jnp.isfinite(y)))
    assert bool(jnp.all(jnp.abs(y) <= 1.0 + 1e-6))    # tanh range
    print("KERNEL_OK")
</pallas_src>

<mosaic_0001>
module attributes {stable_mosaic.version = 11 : i64} {
  func.func @_implicit_affine_kernel(%arg0: i32, %arg1: i32, %arg2: i32, %arg3: memref<1x9x9x64xbf16, #tpu.memory_space<vmem>>, %arg4: memref<256x128xbf16, #tpu.memory_space<vmem>>, %arg5: memref<1x128xf32, #tpu.memory_space<vmem>>, %arg6: memref<1x128xf32, #tpu.memory_space<vmem>>, %arg7: memref<64x128xbf16, #tpu.memory_space<vmem>>, %arg8: memref<64x128xf32, #tpu.memory_space<vmem>>) attributes {dimension_semantics = [#tpu.dimension_semantics<parallel>, #tpu.dimension_semantics<parallel>, #tpu.dimension_semantics<parallel>], iteration_bounds = array<i64: 1, 1, 1>, scalar_prefetch = 0 : i64, scratch_operands = 1 : i64, tpu.core_type = #tpu.core_type<tc>, window_params = [{transform_indices = @transform_0, window_bounds = array<i64: 1, 9, 9, 64>}, {transform_indices = @transform_1, window_bounds = array<i64: 256, 128>}, {transform_indices = @transform_2, window_bounds = array<i64: 1, 128>}, {transform_indices = @transform_3, window_bounds = array<i64: 1, 128>}, {transform_indices = @transform_4, window_bounds = array<i64: 64, 128>}]} {
    %c8_i32 = arith.constant 8 : i32
    %0 = arith.muli %arg2, %c8_i32 : i32
    %1 = tpu.assume_multiple %0, 8 : i32
    %c0_i32 = arith.constant 0 : i32
    %2 = arith.addi %1, %c0_i32 : i32
    %c0 = arith.constant 0 : index
    %3 = arith.index_cast %2 : i32 to index
    %c0_0 = arith.constant 0 : index
    %c0_1 = arith.constant 0 : index
    %4 = vector.load %arg3[%c0, %3, %c0_0, %c0_1] : memref<1x9x9x64xbf16, #tpu.memory_space<vmem>>, vector<1x8x8x64xbf16>
    %5 = vector.shape_cast %4 : vector<1x8x8x64xbf16> to vector<8x8x64xbf16>
    %6 = vector.shape_cast %5 : vector<8x8x64xbf16> to vector<64x64xbf16>
    %c0_2 = arith.constant 0 : index
    %c0_3 = arith.constant 0 : index
    %7 = vector.load %arg4[%c0_2, %c0_3] : memref<256x128xbf16, #tpu.memory_space<vmem>>, vector<64x128xbf16>
    %cst = arith.constant dense<0.000000e+00> : vector<64x128xf32>
    %8 = tpu.matmul %6, %7, %cst {dimension_numbers = #tpu.dot_dimension_numbers<[1], [0], [0], [1], [0, 0, 1, 1], [], []>} : vector<64x64xbf16>, vector<64x128xbf16>, vector<64x128xf32> -> vector<64x128xf32>
    %c0_4 = arith.constant 0 : index
    %c0_5 = arith.constant 0 : index
    %9 = vector.load %arg8[%c0_4, %c0_5] : memref<64x128xf32, #tpu.memory_space<vmem>>, vector<64x128xf32>
    tpu.vector_store %arg8[%c0_4, %c0_5], %8 {strides = array<i32>} : memref<64x128xf32, #tpu.memory_space<vmem>>, vector<64x128xf32>,
    %c0_i32_6 = arith.constant 0 : i32
    %10 = arith.addi %1, %c0_i32_6 : i32
    %c0_7 = arith.constant 0 : index
    %11 = arith.index_cast %10 : i32 to index
    %c1 = arith.constant 1 : index
    %c0_8 = arith.constant 0 : index
    %12 = vector.load %arg3[%c0_7, %11, %c1, %c0_8] : memref<1x9x9x64xbf16, #tpu.memory_space<vmem>>, vector<1x8x8x64xbf16>
    %13 = vector.shape_cast %12 : vector<1x8x8x64xbf16> to vector<8x8x64xbf16>
    %14 = vector.shape_cast %13 : vector<8x8x64xbf16> to vector<64x64xbf16>
    %c64 = arith.constant 64 : index
    %c0_9 = arith.constant 0 : index
    %15 = vector.load %arg4[%c64, %c0_9] : memref<256x128xbf16, #tpu.memory_space<vmem>>, vector<64x128xbf16>
    %cst_10 = arith.constant dense<0.000000e+00> : vector<64x128xf32>
    %16 = tpu.matmul %14, %15, %cst_10 {dimension_numbers = #tpu.dot_dimension_numbers<[1], [0], [0], [1], [0, 0, 1, 1], [], []>} : vector<64x64xbf16>, vector<64x128xbf16>, vector<64x128xf32> -> vector<64x128xf32>
    %c0_11 = arith.constant 0 : index
    %c0_12 = arith.constant 0 : index
    %17 = vector.load %arg8[%c0_11, %c0_12] : memref<64x128xf32, #tpu.memory_space<vmem>>, vector<64x128xf32>
    %18 = arith.addf %17, %16 : vector<64x128xf32>
    %c0_13 = arith.constant 0 : index
    %c0_14 = arith.constant 0 : index
    %19 = vector.load %arg8[%c0_13, %c0_14] : memref<64x128xf32, #tpu.memory_space<vmem>>, vector<64x128xf32>
    tpu.vector_store %arg8[%c0_13, %c0_14], %18 {strides = array<i32>} : memref<64x128xf32, #tpu.memory_space<vmem>>, vector<64x128xf32>,
    %c1_i32 = arith.constant 1 : i32
    %20 = arith.addi %1, %c1_i32 : i32
    %c0_15 = arith.constant 0 : index
    %21 = arith.index_cast %20 : i32 to index
    %c0_16 = arith.constant 0 : index
    %c0_17 = arith.constant 0 : index
    %22 = vector.load %arg3[%c0_15, %21, %c0_16, %c0_17] : memref<1x9x9x64xbf16, #tpu.memory_space<vmem>>, vector<1x8x8x64xbf16>
    %23 = vector.shape_cast %22 : vector<1x8x8x64xbf16> to vector<8x8x64xbf16>
    %24 = vector.shape_cast %23 : vector<8x8x64xbf16> to vector<64x64xbf16>
    %c128 = arith.constant 128 : index
    %c0_18 = arith.constant 0 : index
    %25 = vector.load %arg4[%c128, %c0_18] : memref<256x128xbf16, #tpu.memory_space<vmem>>, vector<64x128xbf16>
    %cst_19 = arith.constant dense<0.000000e+00> : vector<64x128xf32>
    %26 = tpu.matmul %24, %25, %cst_19 {dimension_numbers = #tpu.dot_dimension_numbers<[1], [0], [0], [1], [0, 0, 1, 1], [], []>} : vector<64x64xbf16>, vector<64x128xbf16>, vector<64x128xf32> -> vector<64x128xf32>
    %c0_20 = arith.constant 0 : index
    %c0_21 = arith.constant 0 : index
    %27 = vector.load %arg8[%c0_20, %c0_21] : memref<64x128xf32, #tpu.memory_space<vmem>>, vector<64x128xf32>
    %28 = arith.addf %27, %26 : vector<64x128xf32>
    %c0_22 = arith.constant 0 : index
    %c0_23 = arith.constant 0 : index
    %29 = vector.load %arg8[%c0_22, %c0_23] : memref<64x128xf32, #tpu.memory_space<vmem>>, vector<64x128xf32>
    tpu.vector_store %arg8[%c0_22, %c0_23], %28 {strides = array<i32>} : memref<64x128xf32, #tpu.memory_space<vmem>>, vector<64x128xf32>,
    %c1_i32_24 = arith.constant 1 : i32
    %30 = arith.addi %1, %c1_i32_24 : i32
    %c0_25 = arith.constant 0 : index
    %31 = arith.index_cast %30 : i32 to index
    %c1_26 = arith.constant 1 : index
    %c0_27 = arith.constant 0 : index
    %32 = vector.load %arg3[%c0_25, %31, %c1_26, %c0_27] : memref<1x9x9x64xbf16, #tpu.memory_space<vmem>>, vector<1x8x8x64xbf16>
    %33 = vector.shape_cast %32 : vector<1x8x8x64xbf16> to vector<8x8x64xbf16>
    %34 = vector.shape_cast %33 : vector<8x8x64xbf16> to vector<64x64xbf16>
    %c192 = arith.constant 192 : index
    %c0_28 = arith.constant 0 : index
    %35 = vector.load %arg4[%c192, %c0_28] : memref<256x128xbf16, #tpu.memory_space<vmem>>, vector<64x128xbf16>
    %cst_29 = arith.constant dense<0.000000e+00> : vector<64x128xf32>
    %36 = tpu.matmul %34, %35, %cst_29 {dimension_numbers = #tpu.dot_dimension_numbers<[1], [0], [0], [1], [0, 0, 1, 1], [], []>} : vector<64x64xbf16>, vector<64x128xbf16>, vector<64x128xf32> -> vector<64x128xf32>
    %c0_30 = arith.constant 0 : index
    %c0_31 = arith.constant 0 : index
    %37 = vector.load %arg8[%c0_30, %c0_31] : memref<64x128xf32, #tpu.memory_space<vmem>>, vector<64x128xf32>
    %38 = arith.addf %37, %36 : vector<64x128xf32>
    %c0_32 = arith.constant 0 : index
    %c0_33 = arith.constant 0 : index
    %39 = vector.load %arg8[%c0_32, %c0_33] : memref<64x128xf32, #tpu.memory_space<vmem>>, vector<64x128xf32>
    tpu.vector_store %arg8[%c0_32, %c0_33], %38 {strides = array<i32>} : memref<64x128xf32, #tpu.memory_space<vmem>>, vector<64x128xf32>,
    %c0_34 = arith.constant 0 : index
    %c0_35 = arith.constant 0 : index
    %40 = vector.load %arg8[%c0_34, %c0_35] : memref<64x128xf32, #tpu.memory_space<vmem>>, vector<64x128xf32>
    %c0_36 = arith.constant 0 : index
    %c0_37 = arith.constant 0 : index
    %41 = vector.load %arg5[%c0_36, %c0_37] : memref<1x128xf32, #tpu.memory_space<vmem>>, vector<1x128xf32>
    %42 = vector.broadcast %41 : vector<1x128xf32> to vector<64x128xf32>
    %43 = arith.mulf %40, %42 : vector<64x128xf32>
    %c0_38 = arith.constant 0 : index
    %c0_39 = arith.constant 0 : index
    %44 = vector.load %arg6[%c0_38, %c0_39] : memref<1x128xf32, #tpu.memory_space<vmem>>, vector<1x128xf32>
    %45 = vector.broadcast %44 : vector<1x128xf32> to vector<64x128xf32>
    %46 = arith.addf %43, %45 : vector<64x128xf32>
    %47 = arith.truncf %46 : vector<64x128xf32> to vector<64x128xbf16>
    %c0_40 = arith.constant 0 : index
    %c0_41 = arith.constant 0 : index
    %48 = vector.load %arg7[%c0_40, %c0_41] : memref<64x128xbf16, #tpu.memory_space<vmem>>, vector<64x128xbf16>
    tpu.vector_store %arg7[%c0_40, %c0_41], %47 {strides = array<i32>} : memref<64x128xbf16, #tpu.memory_space<vmem>>, vector<64x128xbf16>,
    return
  }
  func.func @transform_0(%arg0: i32, %arg1: i32, %arg2: i32) -> (i32, i32, i32, i32) {
    %c0_i32 = arith.constant 0 : i32
    %c0_i32_0 = arith.constant 0 : i32
    %c0_i32_1 = arith.constant 0 : i32
    %c0_i32_2 = arith.constant 0 : i32
    return %arg0, %c0_i32, %c0_i32_0, %c0_i32_1 : i32, i32, i32, i32
  }
  func.func @transform_1(%arg0: i32, %arg1: i32, %arg2: i32) -> (i32, i32) {
    %c0_i32 = arith.constant 0 : i32
    %c0_i32_0 = arith.constant 0 : i32
    return %c0_i32, %arg1 : i32, i32
  }
  func.func @transform_2(%arg0: i32, %arg1: i32, %arg2: i32) -> (i32, i32) {
    %c0_i32 = arith.constant 0 : i32
    %c0_i32_0 = arith.constant 0 : i32
    return %c0_i32, %arg1 : i32, i32
  }
  func.func @transform_3(%arg0: i32, %arg1: i32, %arg2: i32) -> (i32, i32) {
    %c0_i32 = arith.constant 0 : i32
    %c0_i32_0 = arith.constant 0 : i32
    return %c0_i32, %arg1 : i32, i32
  }
  func.func @transform_4(%arg0: i32, %arg1: i32, %arg2: i32) -> (i32, i32) {
    %c1_i32 = arith.constant 1 : i32
    %0 = arith.muli %arg0, %c1_i32 : i32
    %1 = arith.addi %0, %arg2 : i32
    %c0_i32 = arith.constant 0 : i32
    return %1, %arg1 : i32, i32
  }
}

</mosaic_0001>

<llo_original>
// kernel: tpu_custom_call.1
$region0: #{tpu_custom_call.1}
  #allocation0 [shape = 'u32[]', space=smem, size = 0x4, offset = 0x4, fixed_abs, tag = 'smem constant byte address 0x4 - core index']
  #allocation1 [shape = 'u32[144,128]{1,0:T(1,128)}', space=vmem, size = 0x12000, scoped, tag = 'internal scratch']
  #allocation2 [shape = 'f32[64,128]{1,0:T(8,128)}', space=vmem, size = 0x8000, scoped, tag = 'scratch operand']
  %s0 = inlined_call_operand.hbm [shape: bf16[1,9,9,64], index: 0, kind: input, shape index: {}]
  %s1 = inlined_call_operand.hbm [shape: bf16[256,128], index: 1, kind: input, shape index: {}]
  %s2 = inlined_call_operand.vmem [shape: f32[1,128], index: 2, kind: input, shape index: {}]
  %s3 = inlined_call_operand.vmem [shape: f32[1,128], index: 3, kind: input, shape index: {}]
  %s4 = inlined_call_operand.hbm [shape: bf16[64,128], index: 4, kind: output, shape index: {}]
  %s5 = sld [smem:[#allocation0]]
  $region34: #{tpu_custom_call.1} parent=0
    _
  %s7 = ssub.s32 1, %s5
  %s8 = scalar_select 0, %s7, %s5
  $region1: #{tpu_custom_call.1} parent=0
    #allocation3 [shape = 'u8[36864]{0}', space=vmem, size = 0x9000, scoped, tag = 'input window, operand 0, single buffered']
    #allocation4 [shape = 's32[1]{0}', space=sflag, size = 0x4, scoped, tag = 'scoped memory for tpu_custom_call.1']
    #allocation5 [shape = 's32[1]{0}', space=sflag, size = 0x4, scoped, tag = 'scoped memory for tpu_custom_call.1']
    #allocation6 [shape = 'u8[65536]{0}', space=vmem, size = 0x10000, scoped, tag = 'input window, operand 1, single buffered']
    #allocation7 [shape = 's32[1]{0}', space=sflag, size = 0x4, scoped, tag = 'scoped memory for tpu_custom_call.1']
    #allocation8 [shape = 'u8[16384]{0}', space=vmem, size = 0x4000, scoped, tag = 'output window, operand 0, single buffered']
    %9 = vsyncpa [#allocation4], 0
    %10 = vsyncpa [#allocation7], 0
    %11 = vsyncpa [#allocation5], 0
    // Predicated region
    $region2: #{tpu_custom_call.1} parent=1 // pred_check
      _
    $region3: #{tpu_custom_call.1} parent=1 // pred_check_branch
      %13 = sbr.rel (0) target = $region5
    $region4: #{tpu_custom_call.1} parent=1 // pred_region
      %s15 = ssub.s32 1152, 1152
      %16 = vsyncadd [#allocation4], %s15
      %s17 = sshll.u32 [#allocation3], 4
      %s18 = int_to_ptr.vmem [resolvable:$true] %s17
      %23 = dma.hbm_to_vmem [thread:$0]  %s0, 1152, %s18, [#allocation4], 64, 64, 4
    $region5: #{tpu_custom_call.1} parent=1 // pred_fallthru
      _
    // Predicated region
    $region6: #{tpu_custom_call.1} parent=1 // pred_check
      _
    $region7: #{tpu_custom_call.1} parent=1 // pred_check_branch
      %25 = sbr.rel (0) target = $region9
    $region8: #{tpu_custom_call.1} parent=1 // pred_region
      %s27 = ssub.s32 2048, 2048
      %28 = vsyncadd [#allocation7], %s27
      %s29 = sshll.u32 [#allocation6], 4
      %s30 = int_to_ptr.vmem [resolvable:$true] %s29
      %35 = dma.hbm_to_vmem [thread:$0]  %s1, 2048, %s30, [#allocation7], 64, 64, 4
    $region9: #{tpu_custom_call.1} parent=1 // pred_fallthru
      _
    // Predicated region
    $region10: #{tpu_custom_call.1} parent=1 // pred_check
      _
    $region11: #{tpu_custom_call.1} parent=1 // pred_check_branch
      %37 = sbr.rel (0) target = $region13
    $region12: #{tpu_custom_call.1} parent=1 // pred_region
      _
    $region13: #{tpu_custom_call.1} parent=1 // pred_fallthru
      _
    // Predicated region
    $region14: #{tpu_custom_call.1} parent=1 // pred_check
      _
    $region15: #{tpu_custom_call.1} parent=1 // pred_check_branch
      %39 = sbr.rel (0) target = $region17
    $region16: #{tpu_custom_call.1} parent=1 // pred_region
      _
    $region17: #{tpu_custom_call.1} parent=1 // pred_fallthru
      _
    // Predicated region
    $region18: #{tpu_custom_call.1} parent=1 // pred_check
      _
    $region19: #{tpu_custom_call.1} parent=1 // pred_check_branch
      %41 = sbr.rel (0) target = $region21
    $region20: #{tpu_custom_call.1} parent=1 // pred_region
      %42 = dma.done [#allocation4], 1152
    $region21: #{tpu_custom_call.1} parent=1 // pred_fallthru
      _
    // Predicated region
    $region22: #{tpu_custom_call.1} parent=1 // pred_check
      _
    $region23: #{tpu_custom_call.1} parent=1 // pred_check_branch
      %44 = sbr.rel (0) target = $region25
    $region24: #{tpu_custom_call.1} parent=1 // pred_region
      %45 = dma.done [#allocation7], 2048
    $region25: #{tpu_custom_call.1} parent=1 // pred_fallthru
      _
    %s46 = sadd.s32 0, 0
    %s47 = smul.u32 8, %s46
    %s49 = smul.u32 0, 8
    %s50 = smul.u32 %s49, 2
    %s51 = smul.addr %s50, 4
    %s52 = scalar_lea.vmem [#allocation3], %s51
    %v53 = vld [vmem:[%s52] sm:$0xf]
    %v54 = vld [vmem:[%s52 + $0x8] sm:$0xf]
    %v55 = vld [vmem:[%s52 + $0x10] sm:$0xf]
    %v56 = vld [vmem:[%s52 + $0x18] sm:$0xf]
    %v57 = vld [vmem:[%s52 + $0x20] sm:$0xf]
    %v58 = vld [vmem:[%s52 + $0x28] sm:$0xf]
    %v59 = vld [vmem:[%s52 + $0x30] sm:$0xf]
    %v60 = vld [vmem:[%s52 + $0x38] sm:$0xf]
    %v61 = vld [vmem:[#allocation6] sm:$0xf]
    %v62 = vld [vmem:[#allocation6 + $0x4] sm:$0xf]
    %v63 = vld [vmem:[#allocation6 + $0x8] sm:$0xf]
    %v64 = vld [vmem:[#allocation6 + $0xc] sm:$0xf]
    %v65 = vld [vmem:[#allocation6 + $0x10] sm:$0xf]
    %v66 = vld [vmem:[#allocation6 + $0x14] sm:$0xf]
    %v67 = vld [vmem:[#allocation6 + $0x18] sm:$0xf]
    %v68 = vld [vmem:[#allocation6 + $0x1c] sm:$0xf]
    %v77 = vunpack.c.l.b16 %v53
    %v78 = vunpack.c.l.b16 %v54
    %v79 = vunpack.c.l.b16 %v55
    %v80 = vunpack.c.l.b16 %v56
    %v81 = vunpack.c.l.b16 %v57
    %v82 = vunpack.c.l.b16 %v58
    %v83 = vunpack.c.l.b16 %v59
    %v84 = vunpack.c.l.b16 %v60
    %v85 = vpack.c.b16 %v78, %v77
    %v86 = vpack.c.b16 %v80, %v79
    %v87 = vpack.c.b16 %v82, %v81
    %v88 = vpack.c.b16 %v84, %v83
    %v97 = vunpack.c.l.b16 %v61
    %v98 = vunpack.c.l.b16 %v62
    %v99 = vunpack.c.l.b16 %v63
    %v100 = vunpack.c.l.b16 %v64
    %v101 = vunpack.c.l.b16 %v65
    %v102 = vunpack.c.l.b16 %v66
    %v103 = vunpack.c.l.b16 %v67
    %v104 = vunpack.c.l.b16 %v68
    %v105 = vpack.c.b16 %v98, %v97
    %v106 = vpack.c.b16 %v100, %v99
    %v107 = vpack.c.b16 %v102, %v101
    %v108 = vpack.c.b16 %v104, %v103
    %vm113 = vcmask 523264
    %v115 = vsel %vm113, %v85, 0
    %v118 = vsel %vm113, %v86, 0
    %v121 = vsel %vm113, %v87, 0
    %v124 = vsel %vm113, %v88, 0
    %126 = vmatprep.subr.bf16.mxu0 0
    %127 = vmatpush1.bf16.msra.mxu0 %v105
    %128 = vmatprep.subr.bf16.mxu0 0
    %129 = vmatpush1.bf16.msra.mxu0 %v106
    %130 = vmatprep.subr.bf16.mxu0 0
    %131 = vmatpush1.bf16.msra.mxu0 %v107
    %132 = vmatprep.subr.bf16.mxu0 0
    %133 = vmatpush1.bf16.msra.mxu0 %v108
    %134 = vmatprep.subr.bf16.mxu0 0
    %135 = vmatpush1.bf16.msra.mxu0 0
    %136 = vmatprep.subr.bf16.mxu0 0
    %137 = vmatpush1.bf16.msra.mxu0 0
    %138 = vmatprep.subr.bf16.mxu0 0
    %139 = vmatpush1.bf16.msra.mxu0 0
    %140 = vmatprep.subr.bf16.mxu0 0
    %141 = vmatpush1.bf16.msra.mxu0 0
    %142 = vmatprep.subr.bf16.mxu0 0
    %143 = vmatpush1.bf16.msra.mxu0 0
    %144 = vmatprep.subr.bf16.mxu0 0
    %145 = vmatpush1.bf16.msra.mxu0 0
    %146 = vmatprep.subr.bf16.mxu0 0
    %147 = vmatpush1.bf16.msra.mxu0 0
    %148 = vmatprep.subr.bf16.mxu0 0
    %149 = vmatpush1.bf16.msra.mxu0 0
    %150 = vmatprep.subr.bf16.mxu0 0
    %151 = vmatpush1.bf16.msra.mxu0 0
    %152 = vmatprep.subr.bf16.mxu0 0
    %153 = vmatpush1.bf16.msra.mxu0 0
    %154 = vmatprep.subr.bf16.mxu0 0
    %155 = vmatpush1.bf16.msra.mxu0 0
    %156 = vmatprep.subr.bf16.mxu0 0
    %157 = vmatpush1.bf16.msra.mxu0 0
    %158 = vmatprep.mubr.bf16.mxu0 0
    %159 = vmatmul.mubr.bf16.gmra.mrb[0].mxu0 %v115
    %v160 = vpop.f32.mrb[0].mxu0
    %v161 = vadd.f32 0.0, %v160
    %v162 = vpop.f32.mrb[0].mxu0
    %v163 = vpop.f32.mrb[0].mxu0
    %v164 = vadd.f32 0.0, %v163
    %v165 = vpop.f32.mrb[0].mxu0
    %166 = vmatprep.mubr.bf16.mxu0 0
    %167 = vmatmul.mubr.bf16.gmra.mrb[0].mxu0 %v118
    %v168 = vpop.f32.mrb[0].mxu0
    %v169 = vadd.f32 0.0, %v168
    %v170 = vpop.f32.mrb[0].mxu0
    %v171 = vpop.f32.mrb[0].mxu0
    %v172 = vadd.f32 0.0, %v171
    %v173 = vpop.f32.mrb[0].mxu0
    %174 = vmatprep.mubr.bf16.mxu0 0
    %175 = vmatmul.mubr.bf16.gmra.mrb[0].mxu0 %v121
    %v176 = vpop.f32.mrb[0].mxu0
    %v177 = vadd.f32 0.0, %v176
    %v178 = vpop.f32.mrb[0].mxu0
    %v179 = vpop.f32.mrb[0].mxu0
    %v180 = vadd.f32 0.0, %v179
    %v181 = vpop.f32.mrb[0].mxu0
    %182 = vmatprep.mubr.bf16.mxu0 0
    %183 = vmatmul.mubr.bf16.gmra.mrb[0].mxu0 %v124
    %v184 = vpop.f32.mrb[0].mxu0
    %v185 = vadd.f32 0.0, %v184
    %v186 = vpop.f32.mrb[0].mxu0
    %v187 = vpop.f32.mrb[0].mxu0
    %v188 = vadd.f32 0.0, %v187
    %v189 = vpop.f32.mrb[0].mxu0
    %190 = vdwg.mxu0
    %191 = vst [vmem:[#allocation2] sm:$0xff] %v161
    %192 = vst [vmem:[#allocation2 + $0x8] sm:$0xff] %v164
    %193 = vst [vmem:[#allocation2 + $0x10] sm:$0xff] %v169
    %194 = vst [vmem:[#allocation2 + $0x18] sm:$0xff] %v172
    %195 = vst [vmem:[#allocation2 + $0x20] sm:$0xff] %v177
    %196 = vst [vmem:[#allocation2 + $0x28] sm:$0xff] %v180
    %197 = vst [vmem:[#allocation2 + $0x30] sm:$0xff] %v185
    %198 = vst [vmem:[#allocation2 + $0x38] sm:$0xff] %v188
    %v199 = vld [vmem:[%s52] sm:$0xf]
    %v200 = vld [vmem:[%s52 + $0x4] sm:$0x1]
    %v201 = vld [vmem:[%s52 + $0x8] sm:$0xf]
    %v202 = vld [vmem:[%s52 + $0xc] sm:$0x1]
    %v203 = vld [vmem:[%s52 + $0x10] sm:$0xf]
    %v204 = vld [vmem:[%s52 + $0x14] sm:$0x1]
    %v205 = vld [vmem:[%s52 + $0x18] sm:$0xf]
    %v206 = vld [vmem:[%s52 + $0x1c] sm:$0x1]
    %v207 = vld [vmem:[%s52 + $0x20] sm:$0xf]
    %v208 = vld [vmem:[%s52 + $0x24] sm:$0x1]
    %v209 = vld [vmem:[%s52 + $0x28] sm:$0xf]
    %v210 = vld [vmem:[%s52 + $0x2c] sm:$0x1]
    %v211 = vld [vmem:[%s52 + $0x30] sm:$0xf]
    %v212 = vld [vmem:[%s52 + $0x34] sm:$0x1]
    %v213 = vld [vmem:[%s52 + $0x38] sm:$0xf]
    %v214 = vld [vmem:[%s52 + $0x3c] sm:$0x1]
    %vm215 = vsmask.f32 3328
    %vm216 = vsmask.f32 7440
    %vm217 = vmor %vm215, %vm216
    %v219 = vshrl.u32 %v199, 16
    %v221 = vrot.slane %v219, 4
    %v222 = vshll.u32 %v199, 16
    %v224 = vrot.slane %v222, 5
    %v225 = vor.u32 %v221, %v224
    %v226 = vrot.slane %v225, 4
    %v228 = vshll.u32 %v200, 16
    %v230 = vrot.slane %v228, 5
    %v231 = vsel %vm217, %v226, %v230
    %v233 = vshrl.u32 %v201, 16
    %v235 = vrot.slane %v233, 4
    %v236 = vshll.u32 %v201, 16
    %v238 = vrot.slane %v236, 5
    %v239 = vor.u32 %v235, %v238
    %v240 = vrot.slane %v239, 4
    %v242 = vshll.u32 %v202, 16
    %v244 = vrot.slane %v242, 5
    %v245 = vsel %vm217, %v240, %v244
    %v247 = vshrl.u32 %v203, 16
    %v249 = vrot.slane %v247, 4
    %v250 = vshll.u32 %v203, 16
    %v252 = vrot.slane %v250, 5
    %v253 = vor.u32 %v249, %v252
    %v254 = vrot.slane %v253, 4
    %v256 = vshll.u32 %v204, 16
    %v258 = vrot.slane %v256, 5
    %v259 = vsel %vm217, %v254, %v258
    %v261 = vshrl.u32 %v205, 16
    %v263 = vrot.slane %v261, 4
    %v264 = vshll.u32 %v205, 16
    %v266 = vrot.slane %v264, 5
    %v267 = vor.u32 %v263, %v266
    %v268 = vrot.slane %v267, 4
    %v270 = vshll.u32 %v206, 16
    %v272 = vrot.slane %v270, 5
    %v273 = vsel %vm217, %v268, %v272
    %v275 = vshrl.u32 %v207, 16
    %v277 = vrot.slane %v275, 4
    %v278 = vshll.u32 %v207, 16
    %v280 = vrot.slane %v278, 5
    %v281 = vor.u32 %v277, %v280
    %v282 = vrot.slane %v281, 4
    %v284 = vshll.u32 %v208, 16
    %v286 = vrot.slane %v284, 5
    %v287 = vsel %vm217, %v282, %v286
    %v289 = vshrl.u32 %v209, 16
    %v291 = vrot.slane %v289, 4
    %v292 = vshll.u32 %v209, 16
    %v294 = vrot.slane %v292, 5
    %v295 = vor.u32 %v291, %v294
    %v296 = vrot.slane %v295, 4
    %v298 = vshll.u32 %v210, 16
    %v300 = vrot.slane %v298, 5
    %v301 = vsel %vm217, %v296, %v300
    %v303 = vshrl.u32 %v211, 16
    %v305 = vrot.slane %v303, 4
    %v306 = vshll.u32 %v211, 16
    %v308 = vrot.slane %v306, 5
    %v309 = vor.u32 %v305, %v308
    %v310 = vrot.slane %v309, 4
    %v312 = vshll.u32 %v212, 16
    %v314 = vrot.slane %v312, 5
    %v315 = vsel %vm217, %v310, %v314
    %v317 = vshrl.u32 %v213, 16
    %v319 = vrot.slane %v317, 4
    %v320 = vshll.u32 %v213, 16
    %v322 = vrot.slane %v320, 5
    %v323 = vor.u32 %v319, %v322
    %v324 = vrot.slane %v323, 4
    %v326 = vshll.u32 %v214, 16
    %v328 = vrot.slane %v326, 5
    %v329 = vsel %vm217, %v324, %v328
    %v330 = vld [vmem:[#allocation6 + $0x20] sm:$0xf]
    %v331 = vld [vmem:[#allocation6 + $0x24] sm:$0xf]
    %v332 = vld [vmem:[#allocation6 + $0x28] sm:$0xf]
    %v333 = vld [vmem:[#allocation6 + $0x2c] sm:$0xf]
    %v334 = vld [vmem:[#allocation6 + $0x30] sm:$0xf]
    %v335 = vld [vmem:[#allocation6 + $0x34] sm:$0xf]
    %v336 = vld [vmem:[#allocation6 + $0x38] sm:$0xf]
    %v337 = vld [vmem:[#allocation6 + $0x3c] sm:$0xf]
    %v338 = vunpack.c.l.b16 %v231
    %v339 = vunpack.c.l.b16 %v245
    %v340 = vunpack.c.l.b16 %v259
    %v341 = vunpack.c.l.b16 %v273
    %v342 = vunpack.c.l.b16 %v287
    %v343 = vunpack.c.l.b16 %v301
    %v344 = vunpack.c.l.b16 %v315
    %v345 = vunpack.c.l.b16 %v329
    %v346 = vpack.c.b16 %v339, %v338
    %v347 = vpack.c.b16 %v341, %v340
    %v348 = vpack.c.b16 %v343, %v342
    %v349 = vpack.c.b16 %v345, %v344
    %v358 = vunpack.c.l.b16 %v330
    %v359 = vunpack.c.l.b16 %v331
    %v360 = vunpack.c.l.b16 %v332
    %v361 = vunpack.c.l.b16 %v333
    %v362 = vunpack.c.l.b16 %v334
    %v363 = vunpack.c.l.b16 %v335
    %v364 = vunpack.c.l.b16 %v336
    %v365 = vunpack.c.l.b16 %v337
    %v366 = vpack.c.b16 %v359, %v358
    %v367 = vpack.c.b16 %v361, %v360
    %v368 = vpack.c.b16 %v363, %v362
    %v369 = vpack.c.b16 %v365, %v364
    %v375 = vsel %vm113, %v346, 0
    %v378 = vsel %vm113, %v347, 0
    %v381 = vsel %vm113, %v348, 0
    %v384 = vsel %vm113, %v349, 0
    %386 = vmatprep.subr.bf16.mxu0 0
    %387 = vmatpush1.bf16.msra.mxu0 %v366
    %388 = vmatprep.subr.bf16.mxu0 0
    %389 = vmatpush1.bf16.msra.mxu0 %v367
    %390 = vmatprep.subr.bf16.mxu0 0
    %391 = vmatpush1.bf16.msra.mxu0 %v368
    %392 = vmatprep.subr.bf16.mxu0 0
    %393 = vmatpush1.bf16.msra.mxu0 %v369
    %394 = vmatprep.subr.bf16.mxu0 0
    %395 = vmatpush1.bf16.msra.mxu0 0
    %396 = vmatprep.subr.bf16.mxu0 0
    %397 = vmatpush1.bf16.msra.mxu0 0
    %398 = vmatprep.subr.bf16.mxu0 0
    %399 = vmatpush1.bf16.msra.mxu0 0
    %400 = vmatprep.subr.bf16.mxu0 0
    %401 = vmatpush1.bf16.msra.mxu0 0
    %402 = vmatprep.subr.bf16.mxu0 0
    %403 = vmatpush1.bf16.msra.mxu0 0
    %404 = vmatprep.subr.bf16.mxu0 0
    %405 = vmatpush1.bf16.msra.mxu0 0
    %406 = vmatprep.subr.bf16.mxu0 0
    %407 = vmatpush1.bf16.msra.mxu0 0
    %408 = vmatprep.subr.bf16.mxu0 0
    %409 = vmatpush1.bf16.msra.mxu0 0
    %410 = vmatprep.subr.bf16.mxu0 0
    %411 = vmatpush1.bf16.msra.mxu0 0
    %412 = vmatprep.subr.bf16.mxu0 0
    %413 = vmatpush1.bf16.msra.mxu0 0
    %414 = vmatprep.subr.bf16.mxu0 0
    %415 = vmatpush1.bf16.msra.mxu0 0
    %416 = vmatprep.subr.bf16.mxu0 0
    %417 = vmatpush1.bf16.msra.mxu0 0
    %418 = vmatprep.mubr.bf16.mxu0 0
    %419 = vmatmul.mubr.bf16.gmra.mrb[0].mxu0 %v375
    %v420 = vpop.f32.mrb[0].mxu0
    %v421 = vadd.f32 0.0, %v420
    %v422 = vpop.f32.mrb[0].mxu0
    %v423 = vpop.f32.mrb[0].mxu0
    %v424 = vadd.f32 0.0, %v423
    %v425 = vpop.f32.mrb[0].mxu0
    %426 = vmatprep.mubr.bf16.mxu0 0
    %427 = vmatmul.mubr.bf16.gmra.mrb[0].mxu0 %v378
    %v428 = vpop.f32.mrb[0].mxu0
    %v429 = vadd.f32 0.0, %v428
    %v430 = vpop.f32.mrb[0].mxu0
    %v431 = vpop.f32.mrb[0].mxu0
    %v432 = vadd.f32 0.0, %v431
    %v433 = vpop.f32.mrb[0].mxu0
    %434 = vmatprep.mubr.bf16.mxu0 0
    %435 = vmatmul.mubr.bf16.gmra.mrb[0].mxu0 %v381
    %v436 = vpop.f32.mrb[0].mxu0
    %v437 = vadd.f32 0.0, %v436
    %v438 = vpop.f32.mrb[0].mxu0
    %v439 = vpop.f32.mrb[0].mxu0
    %v440 = vadd.f32 0.0, %v439
    %v441 = vpop.f32.mrb[0].mxu0
    %442 = vmatprep.mubr.bf16.mxu0 0
    %443 = vmatmul.mubr.bf16.gmra.mrb[0].mxu0 %v384
    %v444 = vpop.f32.mrb[0].mxu0
    %v445 = vadd.f32 0.0, %v444
    %v446 = vpop.f32.mrb[0].mxu0
    %v447 = vpop.f32.mrb[0].mxu0
    %v448 = vadd.f32 0.0, %v447
    %v449 = vpop.f32.mrb[0].mxu0
    %450 = vdwg.mxu0
    %v451 = vld [vmem:[#allocation2] sm:$0xff]
    %v452 = vld [vmem:[#allocation2 + $0x8] sm:$0xff]
    %v453 = vld [vmem:[#allocation2 + $0x10] sm:$0xff]
    %v454 = vld [vmem:[#allocation2 + $0x18] sm:$0xff]
    %v455 = vld [vmem:[#allocation2 + $0x20] sm:$0xff]
    %v456 = vld [vmem:[#allocation2 + $0x28] sm:$0xff]
    %v457 = vld [vmem:[#allocation2 + $0x30] sm:$0xff]
    %v458 = vld [vmem:[#allocation2 + $0x38] sm:$0xff]
    %v459 = vadd.f32 %v451, %v421
    %v460 = vadd.f32 %v452, %v424
    %v461 = vadd.f32 %v453, %v429
    %v462 = vadd.f32 %v454, %v432
    %v463 = vadd.f32 %v455, %v437
    %v464 = vadd.f32 %v456, %v440
    %v465 = vadd.f32 %v457, %v445
    %v466 = vadd.f32 %v458, %v448
    %467 = vst [vmem:[#allocation2] sm:$0xff] %v459
    %468 = vst [vmem:[#allocation2 + $0x8] sm:$0xff] %v460
    %469 = vst [vmem:[#allocation2 + $0x10] sm:$0xff] %v461
    %470 = vst [vmem:[#allocation2 + $0x18] sm:$0xff] %v462
    %471 = vst [vmem:[#allocation2 + $0x20] sm:$0xff] %v463
    %472 = vst [vmem:[#allocation2 + $0x28] sm:$0xff] %v464
    %473 = vst [vmem:[#allocation2 + $0x30] sm:$0xff] %v465
    %474 = vst [vmem:[#allocation2 + $0x38] sm:$0xff] %v466
    %s475 = sadd.s32 %s49, 1
    %s476 = smul.u32 %s475, 2
    %s477 = smul.addr %s476, 4
    %s478 = scalar_lea.vmem [#allocation3], %s477
    %v479 = vld [vmem:[%s478] sm:$0xf]
    %v480 = vld [vmem:[%s478 + $0x8] sm:$0xf]
    %v481 = vld [vmem:[%s478 + $0x10] sm:$0xf]
    %v482 = vld [vmem:[%s478 + $0x18] sm:$0xf]
    %v483 = vld [vmem:[%s478 + $0x20] sm:$0xf]
    %v484 = vld [vmem:[%s478 + $0x28] sm:$0xf]
    %v485 = vld [vmem:[%s478 + $0x30] sm:$0xf]
    %v486 = vld [vmem:[%s478 + $0x38] sm:$0xf]
    %v487 = vld [vmem:[#allocation6 + $0x40] sm:$0xf]
    %v488 = vld [vmem:[#allocation6 + $0x44] sm:$0xf]
    %v489 = vld [vmem:[#allocation6 + $0x48] sm:$0xf]
    %v490 = vld [vmem:[#allocation6 + $0x4c] sm:$0xf]
    %v491 = vld [vmem:[#allocation6 + $0x50] sm:$0xf]
    %v492 = vld [vmem:[#allocation6 + $0x54] sm:$0xf]
    %v493 = vld [vmem:[#allocation6 + $0x58] sm:$0xf]
    %v494 = vld [vmem:[#allocation6 + $0x5c] sm:$0xf]
    %v503 = vunpack.c.l.b16 %v479
    %v504 = vunpack.c.l.b16 %v480
    %v505 = vunpack.c.l.b16 %v481
    %v506 = vunpack.c.l.b16 %v482
    %v507 = vunpack.c.l.b16 %v483
    %v508 = vunpack.c.l.b16 %v484
    %v509 = vunpack.c.l.b16 %v485
    %v510 = vunpack.c.l.b16 %v486
    %v511 = vpack.c.b16 %v504, %v503
    %v512 = vpack.c.b16 %v506, %v505
    %v513 = vpack.c.b16 %v508, %v507
    %v514 = vpack.c.b16 %v510, %v509
    %v523 = vunpack.c.l.b16 %v487
    %v524 = vunpack.c.l.b16 %v488
    %v525 = vunpack.c.l.b16 %v489
    %v526 = vunpack.c.l.b16 %v490
    %v527 = vunpack.c.l.b16 %v491
    %v528 = vunpack.c.l.b16 %v492
    %v529 = vunpack.c.l.b16 %v493
    %v530 = vunpack.c.l.b16 %v494
    %v531 = vpack.c.b16 %v524, %v523
    %v532 = vpack.c.b16 %v526, %v525
    %v533 = vpack.c.b16 %v528, %v527
    %v534 = vpack.c.b16 %v530, %v529
    %v540 = vsel %vm113, %v511, 0
    %v543 = vsel %vm113, %v512, 0
    %v546 = vsel %vm113, %v513, 0
    %v549 = vsel %vm113, %v514, 0
    %551 = vmatprep.subr.bf16.mxu0 0
    %552 = vmatpush1.bf16.msra.mxu0 %v531
    %553 = vmatprep.subr.bf16.mxu0 0
    %554 = vmatpush1.bf16.msra.mxu0 %v532
    %555 = vmatprep.subr.bf16.mxu0 0
    %556 = vmatpush1.bf16.msra.mxu0 %v533
    %557 = vmatprep.subr.bf16.mxu0 0
    %558 = vmatpush1.bf16.msra.mxu0 %v534
    %559 = vmatprep.subr.bf16.mxu0 0
    %560 = vmatpush1.bf16.msra.mxu0 0
    %561 = vmatprep.subr.bf16.mxu0 0
    %562 = vmatpush1.bf16.msra.mxu0 0
    %563 = vmatprep.subr.bf16.mxu0 0
    %564 = vmatpush1.bf16.msra.mxu0 0
    %565 = vmatprep.subr.bf16.mxu0 0
    %566 = vmatpush1.bf16.msra.mxu0 0
    %567 = vmatprep.subr.bf16.mxu0 0
    %568 = vmatpush1.bf16.msra.mxu0 0
    %569 = vmatprep.subr.bf16.mxu0 0
    %570 = vmatpush1.bf16.msra.mxu0 0
    %571 = vmatprep.subr.bf16.mxu0 0
    %572 = vmatpush1.bf16.msra.mxu0 0
    %573 = vmatprep.subr.bf16.mxu0 0
    %574 = vmatpush1.bf16.msra.mxu0 0
    %575 = vmatprep.subr.bf16.mxu0 0
    %576 = vmatpush1.bf16.msra.mxu0 0
    %577 = vmatprep.subr.bf16.mxu0 0
    %578 = vmatpush1.bf16.msra.mxu0 0
    %579 = vmatprep.subr.bf16.mxu0 0
    %580 = vmatpush1.bf16.msra.mxu0 0
    %581 = vmatprep.subr.bf16.mxu0 0
    %582 = vmatpush1.bf16.msra.mxu0 0
    %583 = vmatprep.mubr.bf16.mxu0 0
    %584 = vmatmul.mubr.bf16.gmra.mrb[0].mxu0 %v540
    %v585 = vpop.f32.mrb[0].mxu0
    %v586 = vadd.f32 0.0, %v585
    %v587 = vpop.f32.mrb[0].mxu0
    %v588 = vpop.f32.mrb[0].mxu0
    %v589 = vadd.f32 0.0, %v588
    %v590 = vpop.f32.mrb[0].mxu0
    %591 = vmatprep.mubr.bf16.mxu0 0
    %592 = vmatmul.mubr.bf16.gmra.mrb[0].mxu0 %v543
    %v593 = vpop.f32.mrb[0].mxu0
    %v594 = vadd.f32 0.0, %v593
    %v595 = vpop.f32.mrb[0].mxu0
    %v596 = vpop.f32.mrb[0].mxu0
    %v597 = vadd.f32 0.0, %v596
    %v598 = vpop.f32.mrb[0].mxu0
    %599 = vmatprep.mubr.bf16.mxu0 0
    %600 = vmatmul.mubr.bf16.gmra.mrb[0].mxu0 %v546
    %v601 = vpop.f32.mrb[0].mxu0
    %v602 = vadd.f32 0.0, %v601
    %v603 = vpop.f32.mrb[0].mxu0
    %v604 = vpop.f32.mrb[0].mxu0
    %v605 = vadd.f32 0.0, %v604
    %v606 = vpop.f32.mrb[0].mxu0
    %607 = vmatprep.mubr.bf16.mxu0 0
    %608 = vmatmul.mubr.bf16.gmra.mrb[0].mxu0 %v549
    %v609 = vpop.f32.mrb[0].mxu0
    %v610 = vadd.f32 0.0, %v609
    %v611 = vpop.f32.mrb[0].mxu0
    %v612 = vpop.f32.mrb[0].mxu0
    %v613 = vadd.f32 0.0, %v612
    %v614 = vpop.f32.mrb[0].mxu0
    %615 = vdwg.mxu0
    %v616 = vld [vmem:[#allocation2] sm:$0xff]
    %v617 = vld [vmem:[#allocation2 + $0x8] sm:$0xff]
    %v618 = vld [vmem:[#allocation2 + $0x10] sm:$0xff]
    %v619 = vld [vmem:[#allocation2 + $0x18] sm:$0xff]
    %v620 = vld [vmem:[#allocation2 + $0x20] sm:$0xff]
    %v621 = vld [vmem:[#allocation2 + $0x28] sm:$0xff]
    %v622 = vld [vmem:[#allocation2 + $0x30] sm:$0xff]
    %v623 = vld [vmem:[#allocation2 + $0x38] sm:$0xff]
    %v624 = vadd.f32 %v616, %v586
    %v625 = vadd.f32 %v617, %v589
    %v626 = vadd.f32 %v618, %v594
    %v627 = vadd.f32 %v619, %v597
    %v628 = vadd.f32 %v620, %v602
    %v629 = vadd.f32 %v621, %v605
    %v630 = vadd.f32 %v622, %v610
    %v631 = vadd.f32 %v623, %v613
    %632 = vst [vmem:[#allocation2] sm:$0xff] %v624
    %633 = vst [vmem:[#allocation2 + $0x8] sm:$0xff] %v625
    %634 = vst [vmem:[#allocation2 + $0x10] sm:$0xff] %v626
    %635 = vst [vmem:[#allocation2 + $0x18] sm:$0xff] %v627
    %636 = vst [vmem:[#allocation2 + $0x20] sm:$0xff] %v628
    %637 = vst [vmem:[#allocation2 + $0x28] sm:$0xff] %v629
    %638 = vst [vmem:[#allocation2 + $0x30] sm:$0xff] %v630
    %639 = vst [vmem:[#allocation2 + $0x38] sm:$0xff] %v631
    %v640 = vld [vmem:[%s478] sm:$0xf]
    %v641 = vld [vmem:[%s478 + $0x4] sm:$0x1]
    %v642 = vld [vmem:[%s478 + $0x8] sm:$0xf]
    %v643 = vld [vmem:[%s478 + $0xc] sm:$0x1]
    %v644 = vld [vmem:[%s478 + $0x10] sm:$0xf]
    %v645 = vld [vmem:[%s478 + $0x14] sm:$0x1]
    %v646 = vld [vmem:[%s478 + $0x18] sm:$0xf]
    %v647 = vld [vmem:[%s478 + $0x1c] sm:$0x1]
    %v648 = vld [vmem:[%s478 + $0x20] sm:$0xf]
    %v649 = vld [vmem:[%s478 + $0x24] sm:$0x1]
    %v650 = vld [vmem:[%s478 + $0x28] sm:$0xf]
    %v651 = vld [vmem:[%s478 + $0x2c] sm:$0x1]
    %v652 = vld [vmem:[%s478 + $0x30] sm:$0xf]
    %v653 = vld [vmem:[%s478 + $0x34] sm:$0x1]
    %v654 = vld [vmem:[%s478 + $0x38] sm:$0xf]
    %v655 = vld [vmem:[%s478 + $0x3c] sm:$0x1]
    %v657 = vshrl.u32 %v640, 16
    %v659 = vrot.slane %v657, 4
    %v660 = vshll.u32 %v640, 16
    %v662 = vrot.slane %v660, 5
    %v663 = vor.u32 %v659, %v662
    %v664 = vrot.slane %v663, 4
    %v666 = vshll.u32 %v641, 16
    %v668 = vrot.slane %v666, 5
    %v669 = vsel %vm217, %v664, %v668
    %v671 = vshrl.u32 %v642, 16
    %v673 = vrot.slane %v671, 4
    %v674 = vshll.u32 %v642, 16
    %v676 = vrot.slane %v674, 5
    %v677 = vor.u32 %v673, %v676
    %v678 = vrot.slane %v677, 4
    %v680 = vshll.u32 %v643, 16
    %v682 = vrot.slane %v680, 5
    %v683 = vsel %vm217, %v678, %v682
    %v685 = vshrl.u32 %v644, 16
    %v687 = vrot.slane %v685, 4
    %v688 = vshll.u32 %v644, 16
    %v690 = vrot.slane %v688, 5
    %v691 = vor.u32 %v687, %v690
    %v692 = vrot.slane %v691, 4
    %v694 = vshll.u32 %v645, 16
    %v696 = vrot.slane %v694, 5
    %v697 = vsel %vm217, %v692, %v696
    %v699 = vshrl.u32 %v646, 16
    %v701 = vrot.slane %v699, 4
    %v702 = vshll.u32 %v646, 16
    %v704 = vrot.slane %v702, 5
    %v705 = vor.u32 %v701, %v704
    %v706 = vrot.slane %v705, 4
    %v708 = vshll.u32 %v647, 16
    %v710 = vrot.slane %v708, 5
    %v711 = vsel %vm217, %v706, %v710
    %v713 = vshrl.u32 %v648, 16
    %v715 = vrot.slane %v713, 4
    %v716 = vshll.u32 %v648, 16
    %v718 = vrot.slane %v716, 5
    %v719 = vor.u32 %v715, %v718
    %v720 = vrot.slane %v719, 4
    %v722 = vshll.u32 %v649, 16
    %v724 = vrot.slane %v722, 5
    %v725 = vsel %vm217, %v720, %v724
    %v727 = vshrl.u32 %v650, 16
    %v729 = vrot.slane %v727, 4
    %v730 = vshll.u32 %v650, 16
    %v732 = vrot.slane %v730, 5
    %v733 = vor.u32 %v729, %v732
    %v734 = vrot.slane %v733, 4
    %v736 = vshll.u32 %v651, 16
    %v738 = vrot.slane %v736, 5
    %v739 = vsel %vm217, %v734, %v738
    %v741 = vshrl.u32 %v652, 16
    %v743 = vrot.slane %v741, 4
    %v744 = vshll.u32 %v652, 16
    %v746 = vrot.slane %v744, 5
    %v747 = vor.u32 %v743, %v746
    %v748 = vrot.slane %v747, 4
    %v750 = vshll.u32 %v653, 16
    %v752 = vrot.slane %v750, 5
    %v753 = vsel %vm217, %v748, %v752
    %v755 = vshrl.u32 %v654, 16
    %v757 = vrot.slane %v755, 4
    %v758 = vshll.u32 %v654, 16
    %v760 = vrot.slane %v758, 5
    %v761 = vor.u32 %v757, %v760
    %v762 = vrot.slane %v761, 4
    %v764 = vshll.u32 %v655, 16
    %v766 = vrot.slane %v764, 5
    %v767 = vsel %vm217, %v762, %v766
    %v768 = vld [vmem:[#allocation6 + $0x60] sm:$0xf]
    %v769 = vld [vmem:[#allocation6 + $0x64] sm:$0xf]
    %v770 = vld [vmem:[#allocation6 + $0x68] sm:$0xf]
    %v771 = vld [vmem:[#allocation6 + $0x6c] sm:$0xf]
    %v772 = vld [vmem:[#allocation6 + $0x70] sm:$0xf]
    %v773 = vld [vmem:[#allocation6 + $0x74] sm:$0xf]
    %v774 = vld [vmem:[#allocation6 + $0x78] sm:$0xf]
    %v775 = vld [vmem:[#allocation6 + $0x7c] sm:$0xf]
    %v776 = vunpack.c.l.b16 %v669
    %v777 = vunpack.c.l.b16 %v683
    %v778 = vunpack.c.l.b16 %v697
    %v779 = vunpack.c.l.b16 %v711
    %v780 = vunpack.c.l.b16 %v725
    %v781 = vunpack.c.l.b16 %v739
    %v782 = vunpack.c.l.b16 %v753
    %v783 = vunpack.c.l.b16 %v767
    %v784 = vpack.c.b16 %v777, %v776
    %v785 = vpack.c.b16 %v779, %v778
    %v786 = vpack.c.b16 %v781, %v780
    %v787 = vpack.c.b16 %v783, %v782
    %v796 = vunpack.c.l.b16 %v768
    %v797 = vunpack.c.l.b16 %v769
    %v798 = vunpack.c.l.b16 %v770
    %v799 = vunpack.c.l.b16 %v771
    %v800 = vunpack.c.l.b16 %v772
    %v801 = vunpack.c.l.b16 %v773
    %v802 = vunpack.c.l.b16 %v774
    %v803 = vunpack.c.l.b16 %v775
    %v804 = vpack.c.b16 %v797, %v796
    %v805 = vpack.c.b16 %v799, %v798
    %v806 = vpack.c.b16 %v801, %v800
    %v807 = vpack.c.b16 %v803, %v802
    %v813 = vsel %vm113, %v784, 0
    %v816 = vsel %vm113, %v785, 0
    %v819 = vsel %vm113, %v786, 0
    %v822 = vsel %vm113, %v787, 0
    %824 = vmatprep.subr.bf16.mxu0 0
    %825 = vmatpush1.bf16.msra.mxu0 %v804
    %826 = vmatprep.subr.bf16.mxu0 0
    %827 = vmatpush1.bf16.msra.mxu0 %v805
    %828 = vmatprep.subr.bf16.mxu0 0
    %829 = vmatpush1.bf16.msra.mxu0 %v806
    %830 = vmatprep.subr.bf16.mxu0 0
    %831 = vmatpush1.bf16.msra.mxu0 %v807
    %832 = vmatprep.subr.bf16.mxu0 0
    %833 = vmatpush1.bf16.msra.mxu0 0
    %834 = vmatprep.subr.bf16.mxu0 0
    %835 = vmatpush1.bf16.msra.mxu0 0
    %836 = vmatprep.subr.bf16.mxu0 0
    %837 = vmatpush1.bf16.msra.mxu0 0
    %838 = vmatprep.subr.bf16.mxu0 0
    %839 = vmatpush1.bf16.msra.mxu0 0
    %840 = vmatprep.subr.bf16.mxu0 0
    %841 = vmatpush1.bf16.msra.mxu0 0
    %842 = vmatprep.subr.bf16.mxu0 0
    %843 = vmatpush1.bf16.msra.mxu0 0
    %844 = vmatprep.subr.bf16.mxu0 0
    %845 = vmatpush1.bf16.msra.mxu0 0
    %846 = vmatprep.subr.bf16.mxu0 0
    %847 = vmatpush1.bf16.msra.mxu0 0
    %848 = vmatprep.subr.bf16.mxu0 0
    %849 = vmatpush1.bf16.msra.mxu0 0
    %850 = vmatprep.subr.bf16.mxu0 0
    %851 = vmatpush1.bf16.msra.mxu0 0
    %852 = vmatprep.subr.bf16.mxu0 0
    %853 = vmatpush1.bf16.msra.mxu0 0
    %854 = vmatprep.subr.bf16.mxu0 0
    %855 = vmatpush1.bf16.msra.mxu0 0
    %856 = vmatprep.mubr.bf16.mxu0 0
    %857 = vmatmul.mubr.bf16.gmra.mrb[0].mxu0 %v813
    %v858 = vpop.f32.mrb[0].mxu0
    %v859 = vadd.f32 0.0, %v858
    %v860 = vpop.f32.mrb[0].mxu0
    %v861 = vpop.f32.mrb[0].mxu0
    %v862 = vadd.f32 0.0, %v861
    %v863 = vpop.f32.mrb[0].mxu0
    %864 = vmatprep.mubr.bf16.mxu0 0
    %865 = vmatmul.mubr.bf16.gmra.mrb[0].mxu0 %v816
    %v866 = vpop.f32.mrb[0].mxu0
    %v867 = vadd.f32 0.0, %v866
    %v868 = vpop.f32.mrb[0].mxu0
    %v869 = vpop.f32.mrb[0].mxu0
    %v870 = vadd.f32 0.0, %v869
    %v871 = vpop.f32.mrb[0].mxu0
    %872 = vmatprep.mubr.bf16.mxu0 0
    %873 = vmatmul.mubr.bf16.gmra.mrb[0].mxu0 %v819
    %v874 = vpop.f32.mrb[0].mxu0
    %v875 = vadd.f32 0.0, %v874
    %v876 = vpop.f32.mrb[0].mxu0
    %v877 = vpop.f32.mrb[0].mxu0
    %v878 = vadd.f32 0.0, %v877
    %v879 = vpop.f32.mrb[0].mxu0
    %880 = vmatprep.mubr.bf16.mxu0 0
    %881 = vmatmul.mubr.bf16.gmra.mrb[0].mxu0 %v822
    %v882 = vpop.f32.mrb[0].mxu0
    %v883 = vadd.f32 0.0, %v882
    %v884 = vpop.f32.mrb[0].mxu0
    %v885 = vpop.f32.mrb[0].mxu0
    %v886 = vadd.f32 0.0, %v885
    %v887 = vpop.f32.mrb[0].mxu0
    %888 = vdwg.mxu0
    %v889 = vld [vmem:[#allocation2] sm:$0xff]
    %v890 = vld [vmem:[#allocation2 + $0x8] sm:$0xff]
    %v891 = vld [vmem:[#allocation2 + $0x10] sm:$0xff]
    %v892 = vld [vmem:[#allocation2 + $0x18] sm:$0xff]
    %v893 = vld [vmem:[#allocation2 + $0x20] sm:$0xff]
    %v894 = vld [vmem:[#allocation2 + $0x28] sm:$0xff]
    %v895 = vld [vmem:[#allocation2 + $0x30] sm:$0xff]
    %v896 = vld [vmem:[#allocation2 + $0x38] sm:$0xff]
    %v897 = vadd.f32 %v889, %v859
    %v898 = vadd.f32 %v890, %v862
    %v899 = vadd.f32 %v891, %v867
    %v900 = vadd.f32 %v892, %v870
    %v901 = vadd.f32 %v893, %v875
    %v902 = vadd.f32 %v894, %v878
    %v903 = vadd.f32 %v895, %v883
    %v904 = vadd.f32 %v896, %v886
    %905 = vst [vmem:[#allocation2] sm:$0xff] %v897
    %906 = vst [vmem:[#allocation2 + $0x8] sm:$0xff] %v898
    %907 = vst [vmem:[#allocation2 + $0x10] sm:$0xff] %v899
    %908 = vst [vmem:[#allocation2 + $0x18] sm:$0xff] %v900
    %909 = vst [vmem:[#allocation2 + $0x20] sm:$0xff] %v901
    %910 = vst [vmem:[#allocation2 + $0x28] sm:$0xff] %v902
    %911 = vst [vmem:[#allocation2 + $0x30] sm:$0xff] %v903
    %912 = vst [vmem:[#allocation2 + $0x38] sm:$0xff] %v904
    %v913 = vld [vmem:[#allocation2] sm:$0xff]
    %v914 = vld [vmem:[#allocation2 + $0x8] sm:$0xff]
    %v915 = vld [vmem:[#allocation2 + $0x10] sm:$0xff]
    %v916 = vld [vmem:[#allocation2 + $0x18] sm:$0xff]
    %v917 = vld [vmem:[#allocation2 + $0x20] sm:$0xff]
    %v918 = vld [vmem:[#allocation2 + $0x28] sm:$0xff]
    %v919 = vld [vmem:[#allocation2 + $0x30] sm:$0xff]
    %v920 = vld [vmem:[#allocation2 + $0x38] sm:$0xff]
    %v921 = vld [vmem:[%s2] sm:$0x1]
    %v923 = vlaneseq
    %v924 = vshrl.u32 %v923, 7
    %v925 = vsub.s32 0, %v924
    %v926 = vrot.slane %v921, %v925
    %v928 = vmul.f32 %v913, %v926
    %v929 = vmul.f32 %v914, %v926
    %v930 = vmul.f32 %v915, %v926
    %v931 = vmul.f32 %v916, %v926
    %v932 = vmul.f32 %v917, %v926
    %v933 = vmul.f32 %v918, %v926
    %v934 = vmul.f32 %v919, %v926
    %v935 = vmul.f32 %v920, %v926
    %v936 = vld [vmem:[%s3] sm:$0x1]
    %v938 = vlaneseq
    %v939 = vshrl.u32 %v938, 7
    %v940 = vsub.s32 0, %v939
    %v941 = vrot.slane %v936, %v940
    %v943 = vadd.f32 %v928, %v941
    %v944 = vadd.f32 %v929, %v941
    %v945 = vadd.f32 %v930, %v941
    %v946 = vadd.f32 %v931, %v941
    %v947 = vadd.f32 %v932, %v941
    %v948 = vadd.f32 %v933, %v941
    %v949 = vadd.f32 %v934, %v941
    %v950 = vadd.f32 %v935, %v941
    %v951 = vpack.c.bf16 %v944, %v943
    %v952 = vpack.c.bf16 %v946, %v945
    %v953 = vpack.c.bf16 %v948, %v947
    %v954 = vpack.c.bf16 %v950, %v949
    %v959 = vunpack.c.l.b16 %v951
    %v960 = vunpack.c.h.b16 %v951
    %v961 = vunpack.c.l.b16 %v952
    %v962 = vunpack.c.h.b16 %v952
    %v963 = vunpack.c.l.b16 %v953
    %v964 = vunpack.c.h.b16 %v953
    %v965 = vunpack.c.l.b16 %v954
    %v966 = vunpack.c.h.b16 %v954
    %v967 = vpack.c.b16 %v959, %v959
    %v968 = vpack.c.b16 %v960, %v960
    %v969 = vpack.c.b16 %v961, %v961
    %v970 = vpack.c.b16 %v962, %v962
    %v971 = vpack.c.b16 %v963, %v963
    %v972 = vpack.c.b16 %v964, %v964
    %v973 = vpack.c.b16 %v965, %v965
    %v974 = vpack.c.b16 %v966, %v966
    %983 = vst [vmem:[#allocation8] sm:$0xf] %v967
    %984 = vst [vmem:[#allocation8 + $0x4] sm:$0xf] %v968
    %985 = vst [vmem:[#allocation8 + $0x8] sm:$0xf] %v969
    %986 = vst [vmem:[#allocation8 + $0xc] sm:$0xf] %v970
    %987 = vst [vmem:[#allocation8 + $0x10] sm:$0xf] %v971
    %988 = vst [vmem:[#allocation8 + $0x14] sm:$0xf] %v972
    %989 = vst [vmem:[#allocation8 + $0x18] sm:$0xf] %v973
    %990 = vst [vmem:[#allocation8 + $0x1c] sm:$0xf] %v974
    // Predicated region
    $region26: #{tpu_custom_call.1} parent=1 // pred_check
      _
    $region27: #{tpu_custom_call.1} parent=1 // pred_check_branch
      %992 = sbr.rel (0) target = $region29
    $region28: #{tpu_custom_call.1} parent=1 // pred_region
      %s993 = sadd.s32 0, 0
      %s994 = smul.u32 8, %s993
      %s996 = ssub.s32 512, 512
      %997 = vsyncadd [#allocation5], %s996
      %s998 = smul.addr %s994, 64
      %s999 = scalar_lea.hbm %s4, %s998
      %s1000 = sshll.u32 [#allocation8], 4
      %s1001 = int_to_ptr.vmem [resolvable:$true] %s1000
      %1006 = dma.vmem_to_hbm [thread:$0]  %s1001, 512, %s999, [#allocation5], 64, 64, 4
    $region29: #{tpu_custom_call.1} parent=1 // pred_fallthru
      _
    // Predicated region
    $region30: #{tpu_custom_call.1} parent=1 // pred_check
      _
    $region31: #{tpu_custom_call.1} parent=1 // pred_check_branch
      %1008 = sbr.rel (0) target = $region33
    $region32: #{tpu_custom_call.1} parent=1 // pred_region
      %1009 = dma.done [#allocation5], 512
    $region33: #{tpu_custom_call.1} parent=1 // pred_fallthru
      _
    %1010 = vsyncpa [#allocation4], 1
    %1011 = vsyncpa [#allocation7], 1
    %1012 = vsyncpa [#allocation5], 1

</llo_original>
